<compile_context>
chip_gen: v6e
topology: v6e:2x2x1
jax: 0.10.0
libtpu: 0.0.40
codegen_flags: <defaults>
</compile_context>

<pallas_src>
import jax
import jax.numpy as jnp
import numpy as np
from jax.experimental import pallas as pl
from jax.experimental.pallas import tpu as pltpu

# Synthetic backbone_conf (BEV-style bounds), deterministic in-script.
backbone_conf = {
    "x_bound": [-51.2, 51.2, 0.8],
    "y_bound": [-51.2, 51.2, 0.8],
}


def _loss_kernel(corr_ref, wm_ref, gt_ref, out_ref):
    # corr_ref: (TB, HW) native dtype, lane-dense flattened correlation maps
    # wm_ref:   (HW, 128) f32, grid-invariant weight matrix (cols: [1, w_x, w_y, 0...])
    # gt_ref:   (TB, 2)  f32, merged (gt_x, gt_y)
    x = corr_ref[...].astype(jnp.float32)                  # cast in-kernel (bf16-safe)
    m = jnp.max(x, axis=-1, keepdims=True)                 # (TB, 1) softmax stability
    e = jnp.exp(x - m)                                     # (TB, HW), values in (0, 1]

    # One MXU matmul replaces the three cross-lane (XLU) reductions:
    #   r[:, 0] = sum(e), r[:, 1] = sum(e * w_x), r[:, 2] = sum(e * w_y)
    r = jnp.dot(e, wm_ref[...], preferred_element_type=jnp.float32)   # (TB, 128)

    inv_s = 1.0 / r[:, 0:1]        # exact divide; only TB of them per step
    exp_x = r[:, 1:2] * inv_s
    exp_y = r[:, 2:3] * inv_s

    # Per-row L1 contribution; final sum is done outside the kernel.
    out_ref[...] = (jnp.abs(exp_x - gt_ref[:, 0:1]) +
                    jnp.abs(exp_y - gt_ref[:, 1:2]))


def _pick_batch_tile(B, HW, itemsize):
    """Rows of corr per grid step.

    Targets ~4 MiB input blocks (measured HBM-roofline plateau), capped at 4096
    rows, kept a multiple of 16 (valid sublane packing for f32 and bf16), and
    clamped so large batches still give >= 2 grid steps (v7x megacore).
    """
    if B <= 16:
        return B                                  # full-extent block dim is always legal
    rows = (4 << 20) // (HW * itemsize)           # ~4 MiB of corr per step
    rows = min(rows, 4096, max(16, B // 2))       # >= 2 steps when B is large
    return max(16, (rows // 16) * 16)


def exp_2d_loss(corr, gt_x, gt_y):
    *lead, H, W = corr.shape
    B = int(np.prod(lead)) if lead else 1
    HW = H * W

    scale_x = (backbone_conf["x_bound"][1] - backbone_conf["x_bound"][0]) / H
    scale_y = (backbone_conf["y_bound"][1] - backbone_conf["y_bound"][0]) / W

    # TODO(synk): expectation_xy() is not defined in loss.py; assumed to be a
    # soft-argmax over index coordinates centered at (H/2, W/2), with x along
    # dim -2 (size H) and y along dim -1 (size W), consistent with the /h, /w
    # scaling in forward().  Verify against the real implementation.
    idx = np.arange(HW)
    wm = np.zeros((HW, 128), dtype=np.float32)
    wm[:, 0] = 1.0
    wm[:, 1] = ((idx // W) - H / 2.0) * scale_x        # x weight (already bound-scaled)
    wm[:, 2] = ((idx % W) - W / 2.0) * scale_y         # y weight (already bound-scaled)
    wm = jnp.asarray(wm)

    corr2 = corr.reshape(B, HW)                        # native dtype; no HBM-rewriting astype
    gt2 = jnp.stack([gt_x.reshape(B), gt_y.reshape(B)], axis=-1).astype(jnp.float32)

    TB = _pick_batch_tile(B, HW, corr2.dtype.itemsize)
    num_tiles = pl.cdiv(B, TB)                         # ragged last block, no jnp.pad

    per_row = pl.pallas_call(
        _loss_kernel,
        out_shape=jax.ShapeDtypeStruct((B, 1), jnp.float32),
        grid=(num_tiles,),
        in_specs=[
            pl.BlockSpec((TB, HW), lambda t: (t, 0)),    # lane-dense flattened maps
            pl.BlockSpec((HW, 128), lambda t: (0, 0)),   # grid-invariant MXU weights
            pl.BlockSpec((TB, 2), lambda t: (t, 0)),     # merged (gt_x, gt_y)
        ],
        out_specs=pl.BlockSpec((TB, 1), lambda t: (t, 0)),
        compiler_params=pltpu.CompilerParams(
            dimension_semantics=("parallel",),           # no accumulator -> megacore OK
            # Explicit, generation-safe scoped-VMEM limit: plenty for the
            # double-buffered 4 MiB blocks + f32 temporaries on v5e/v6e, and still
            # within v7x's 64 MiB physical VMEM.
            vmem_limit_bytes=32 << 20,
        ),
    )(corr2, wm, gt2)

    # Out-of-bounds rows of the ragged tail block are never written (masked),
    # so per_row has exactly B valid rows.
    return jnp.sum(per_row[:, 0])


def exp_2d_loss_ref(corr, gt_x, gt_y):
    """Pure-JAX reference matching the PyTorch forward semantics."""
    B, H, W = corr.shape
    logp = jax.nn.log_softmax(corr.reshape(B, H * W), axis=-1).reshape(B, H, W)
    p = jnp.exp(logp)
    row = jnp.arange(H, dtype=jnp.float32) - H / 2.0
    col = jnp.arange(W, dtype=jnp.float32) - W / 2.0
    e_x = jnp.sum(p * row[None, :, None], axis=(1, 2))
    e_y = jnp.sum(p * col[None, None, :], axis=(1, 2))
    scale_x = (backbone_conf["x_bound"][1] - backbone_conf["x_bound"][0]) / H
    scale_y = (backbone_conf["y_bound"][1] - backbone_conf["y_bound"][0]) / W
    exp_x = e_x * scale_x
    exp_y = e_y * scale_y
    return jnp.sum(jnp.abs(exp_x - gt_x)) + jnp.sum(jnp.abs(exp_y - gt_y))


if __name__ == "__main__":
    key = jax.random.PRNGKey(0)

    # Case 1: tiny batch (single full-extent block).
    # Case 2: batch that exercises the tiled grid with a ragged (masked) tail block.
    for B, H, W in [(2, 16, 16), (24, 16, 16)]:
        key, k1, k2, k3 = jax.random.split(key, 4)
        corr = jax.random.normal(k1, (B, H, W), dtype=jnp.float32) * 2.0
        gt_x = jax.random.uniform(k2, (B,), dtype=jnp.float32, minval=-10.0, maxval=10.0)
        gt_y = jax.random.uniform(k3, (B,), dtype=jnp.float32, minval=-10.0, maxval=10.0)

        loss = exp_2d_loss(corr, gt_x, gt_y)
        jax.block_until_ready(loss)

        loss_ref = exp_2d_loss_ref(corr, gt_x, gt_y)
        np.testing.assert_allclose(np.asarray(loss), np.asarray(loss_ref),
                                   rtol=1e-4, atol=1e-4)

    print("KERNEL_OK")
</pallas_src>

<mosaic_0001>
module attributes {stable_mosaic.version = 11 : i64} {
  func.func @_loss_kernel(%arg0: i32, %arg1: memref<2x256xf32, #tpu.memory_space<vmem>>, %arg2: memref<256x128xf32, #tpu.memory_space<vmem>>, %arg3: memref<2x2xf32, #tpu.memory_space<vmem>>, %arg4: memref<2x1xf32, #tpu.memory_space<vmem>>) attributes {dimension_semantics = [#tpu.dimension_semantics<parallel>], iteration_bounds = array<i64: 1>, scalar_prefetch = 0 : i64, scratch_operands = 0 : i64, tpu.core_type = #tpu.core_type<tc>, window_params = [{transform_indices = @transform_0, window_bounds = array<i64: 2, 256>}, {pipeline_mode = #tpu.pipeline_mode<synchronous>, transform_indices = @transform_1, window_bounds = array<i64: 256, 128>}, {transform_indices = @transform_2, window_bounds = array<i64: 2, 2>}, {transform_indices = @transform_3, window_bounds = array<i64: 2, 1>}]} {
    %c0 = arith.constant 0 : index
    %c0_0 = arith.constant 0 : index
    %0 = vector.load %arg1[%c0, %c0_0] : memref<2x256xf32, #tpu.memory_space<vmem>>, vector<2x256xf32>
    %cst = arith.constant dense<0xFF800000> : vector<2xf32>
    %1 = vector.multi_reduction <maximumf>, %0, %cst [1] : vector<2x256xf32> to vector<2xf32>
    %2 = vector.shape_cast %1 : vector<2xf32> to vector<2x1xf32>
    %3 = vector.broadcast %2 : vector<2x1xf32> to vector<2x256xf32>
    %4 = arith.subf %0, %3 : vector<2x256xf32>
    %5 = math.exp %4 : vector<2x256xf32>
    %c0_1 = arith.constant 0 : index
    %c0_2 = arith.constant 0 : index
    %6 = vector.load %arg2[%c0_1, %c0_2] : memref<256x128xf32, #tpu.memory_space<vmem>>, vector<256x128xf32>
    %cst_3 = arith.constant dense<0.000000e+00> : vector<2x128xf32>
    %7 = tpu.matmul %5, %6, %cst_3 {dimension_numbers = #tpu.dot_dimension_numbers<[1], [0], [0], [1], [0, 0, 1, 1], [], []>} : vector<2x256xf32>, vector<256x128xf32>, vector<2x128xf32> -> vector<2x128xf32>
    %8 = vector.extract_strided_slice %7 {offsets = [0, 0], sizes = [2, 1], strides = [1, 1]} : vector<2x128xf32> to vector<2x1xf32>
    %cst_4 = arith.constant 1.000000e+00 : f32
    %9 = vector.broadcast %cst_4 : f32 to vector<2x1xf32>
    %10 = arith.divf %9, %8 : vector<2x1xf32>
    %11 = vector.extract_strided_slice %7 {offsets = [0, 1], sizes = [2, 1], strides = [1, 1]} : vector<2x128xf32> to vector<2x1xf32>
    %12 = arith.mulf %11, %10 : vector<2x1xf32>
    %13 = vector.extract_strided_slice %7 {offsets = [0, 2], sizes = [2, 1], strides = [1, 1]} : vector<2x128xf32> to vector<2x1xf32>
    %14 = arith.mulf %13, %10 : vector<2x1xf32>
    %c0_5 = arith.constant 0 : index
    %c0_6 = arith.constant 0 : index
    %15 = vector.load %arg3[%c0_5, %c0_6] : memref<2x2xf32, #tpu.memory_space<vmem>>, vector<2x1xf32>
    %16 = arith.subf %12, %15 : vector<2x1xf32>
    %17 = math.absf %16 : vector<2x1xf32>
    %c0_7 = arith.constant 0 : index
    %c1 = arith.constant 1 : index
    %18 = vector.load %arg3[%c0_7, %c1] : memref<2x2xf32, #tpu.memory_space<vmem>>, vector<2x1xf32>
    %19 = arith.subf %14, %18 : vector<2x1xf32>
    %20 = math.absf %19 : vector<2x1xf32>
    %21 = arith.addf %17, %20 : vector<2x1xf32>
    %c0_8 = arith.constant 0 : index
    %c0_9 = arith.constant 0 : index
    %22 = vector.load %arg4[%c0_8, %c0_9] : memref<2x1xf32, #tpu.memory_space<vmem>>, vector<2x1xf32>
    tpu.vector_store %arg4[%c0_8, %c0_9], %21 {strides = array<i32>} : memref<2x1xf32, #tpu.memory_space<vmem>>, vector<2x1xf32>,
    return
  }
  func.func @transform_0(%arg0: i32) -> (i32, i32) {
    %c0_i32 = arith.constant 0 : i32
    %c0_i32_0 = arith.constant 0 : i32
    return %arg0, %c0_i32 : i32, i32
  }
  func.func @transform_1(%arg0: i32) -> (i32, i32) {
    %c0_i32 = arith.constant 0 : i32
    %c0_i32_0 = arith.constant 0 : i32
    %c0_i32_1 = arith.constant 0 : i32
    return %c0_i32, %c0_i32_0 : i32, i32
  }
  func.func @transform_2(%arg0: i32) -> (i32, i32) {
    %c0_i32 = arith.constant 0 : i32
    %c0_i32_0 = arith.constant 0 : i32
    return %arg0, %c0_i32 : i32, i32
  }
  func.func @transform_3(%arg0: i32) -> (i32, i32) {
    %c0_i32 = arith.constant 0 : i32
    %c0_i32_0 = arith.constant 0 : i32
    return %arg0, %c0_i32 : i32, i32
  }
}

</mosaic_0001>

<llo_original>
// kernel: tpu_custom_call.1
$region0: #{tpu_custom_call.1}
  #allocation0 [shape = 'u32[]', space=smem, size = 0x4, offset = 0x4, fixed_abs, tag = 'smem constant byte address 0x4 - core index']
  #allocation1 [shape = 'u32[144,128]{1,0:T(1,128)}', space=vmem, size = 0x12000, scoped, tag = 'internal scratch']
  %s0 = inlined_call_operand.hbm [shape: f32[2,256], index: 0, kind: input, shape index: {}]
  %s1 = inlined_call_operand.hbm [shape: f32[256,128], index: 1, kind: input, shape index: {}]
  %s2 = inlined_call_operand.vmem [shape: f32[2,2], index: 2, kind: input, shape index: {}]
  %s3 = inlined_call_operand.vmem [shape: f32[2,1], index: 3, kind: output, shape index: {}]
  %s4 = sld [smem:[#allocation0]]
  $region30: #{tpu_custom_call.1} parent=0
    _
  %s6 = ssub.s32 1, %s4
  %s7 = scalar_select 0, %s6, %s4
  $region1: #{tpu_custom_call.1} parent=0
    #allocation2 [shape = 'u8[2048]{0}', space=vmem, size = 0x800, scoped, tag = 'input window, operand 0, single buffered']
    #allocation3 [shape = 's32[1]{0}', space=sflag, size = 0x4, scoped, tag = 'scoped memory for tpu_custom_call.1']
    #allocation4 [shape = 'u8[131072]{0}', space=vmem, size = 0x20000, scoped, tag = 'input window, operand 1, single buffered']
    #allocation5 [shape = 's32[1]{0}', space=sflag, size = 0x4, scoped, tag = 'scoped memory for tpu_custom_call.1']
    %8 = vsyncpa [#allocation3], 0
    %9 = vsyncpa [#allocation5], 0
    // Predicated region
    $region2: #{tpu_custom_call.1} parent=1 // pred_check
      _
    $region3: #{tpu_custom_call.1} parent=1 // pred_check_branch
      %11 = sbr.rel (0) target = $region5
    $region4: #{tpu_custom_call.1} parent=1 // pred_region
      %s13 = ssub.s32 64, 64
      %14 = vsyncadd [#allocation3], %s13
      %s16 = sshll.u32 [#allocation2], 4
      %s17 = int_to_ptr.vmem [resolvable:$true] %s16
      %19 = dma.hbm_to_vmem [thread:$0]  %s0, 64, %s17, [#allocation3]
    $region5: #{tpu_custom_call.1} parent=1 // pred_fallthru
      _
    // Predicated region
    $region6: #{tpu_custom_call.1} parent=1 // pred_check
      _
    $region7: #{tpu_custom_call.1} parent=1 // pred_check_branch
      %21 = sbr.rel (0) target = $region9
    $region8: #{tpu_custom_call.1} parent=1 // pred_region
      %s23 = ssub.s32 4096, 4096
      %24 = vsyncadd [#allocation5], %s23
      %s25 = sshll.u32 [#allocation4], 4
      %s26 = int_to_ptr.vmem [resolvable:$true] %s25
      %31 = dma.hbm_to_vmem [thread:$0]  %s1, 4096, %s26, [#allocation5], 128, 128, 8
    $region9: #{tpu_custom_call.1} parent=1 // pred_fallthru
      _
    // Predicated region
    $region10: #{tpu_custom_call.1} parent=1 // pred_check
      _
    $region11: #{tpu_custom_call.1} parent=1 // pred_check_branch
      %33 = sbr.rel (0) target = $region13
    $region12: #{tpu_custom_call.1} parent=1 // pred_region
      _
    $region13: #{tpu_custom_call.1} parent=1 // pred_fallthru
      _
    // Predicated region
    $region14: #{tpu_custom_call.1} parent=1 // pred_check
      _
    $region15: #{tpu_custom_call.1} parent=1 // pred_check_branch
      %35 = sbr.rel (0) target = $region17
    $region16: #{tpu_custom_call.1} parent=1 // pred_region
      %36 = dma.done [#allocation3], 64
    $region17: #{tpu_custom_call.1} parent=1 // pred_fallthru
      _
    // Predicated region
    $region18: #{tpu_custom_call.1} parent=1 // pred_check
      _
    $region19: #{tpu_custom_call.1} parent=1 // pred_check_branch
      %38 = sbr.rel (0) target = $region21
    $region20: #{tpu_custom_call.1} parent=1 // pred_region
      %39 = dma.done [#allocation5], 4096
    $region21: #{tpu_custom_call.1} parent=1 // pred_fallthru
      _
    %v40 = vld [vmem:[#allocation2] sm:$0xf]
    %v43 = vunpack.c.l.s4 1983009808
    %v44 = vunpack.c.0.s8 %v43
    %v45 = vlaneseq
    %v46 = vshrl.u32 %v45, 7
    %v47 = vsub.s32 %v44, %v46
    %v48 = vrot.slane %v40, %v47
    %v49 = vcombine.high %v48, %v48
    %vm52 = vcmask 1041408
    %v53 = vsel %vm52, %v48, -inf
    %v54 = vsel %vm52, %v49, -inf
    %v55 = vmax.f32 %v53, %v54
    %56 = vmax.xlane.f32.xlu0 %v55
    %v57 = vpop.xlane.xlu0 %56
    %v60 = vunpack.c.l.s4 269488144
    %v61 = vunpack.c.0.s8 %v60
    %v62 = vlaneseq
    %v63 = vshrl.u32 %v62, 7
    %v64 = vsub.s32 %v61, %v63
    %v65 = vrot.slane %v57, %v64
    %v67 = vsub.f32 %v40, %v65
    %v68 = vmul.f32 %v67, 1.442695
    %v69 = vpow.pop %v68
    %v70 = vld [vmem:[#allocation4] sm:$0xff]
    %v71 = vld [vmem:[#allocation4 + $0x8] sm:$0xff]
    %v72 = vld [vmem:[#allocation4 + $0x10] sm:$0xff]
    %v73 = vld [vmem:[#allocation4 + $0x18] sm:$0xff]
    %v74 = vld [vmem:[#allocation4 + $0x20] sm:$0xff]
    %v75 = vld [vmem:[#allocation4 + $0x28] sm:$0xff]
    %v76 = vld [vmem:[#allocation4 + $0x30] sm:$0xff]
    %v77 = vld [vmem:[#allocation4 + $0x38] sm:$0xff]
    %v78 = vld [vmem:[#allocation4 + $0x40] sm:$0xff]
    %v79 = vld [vmem:[#allocation4 + $0x48] sm:$0xff]
    %v80 = vld [vmem:[#allocation4 + $0x50] sm:$0xff]
    %v81 = vld [vmem:[#allocation4 + $0x58] sm:$0xff]
    %v82 = vld [vmem:[#allocation4 + $0x60] sm:$0xff]
    %v83 = vld [vmem:[#allocation4 + $0x68] sm:$0xff]
    %v84 = vld [vmem:[#allocation4 + $0x70] sm:$0xff]
    %v85 = vld [vmem:[#allocation4 + $0x78] sm:$0xff]
    %v86 = vld [vmem:[#allocation4 + $0x80] sm:$0xff]
    %v87 = vld [vmem:[#allocation4 + $0x88] sm:$0xff]
    %v88 = vld [vmem:[#allocation4 + $0x90] sm:$0xff]
    %v89 = vld [vmem:[#allocation4 + $0x98] sm:$0xff]
    %v90 = vld [vmem:[#allocation4 + $0xa0] sm:$0xff]
    %v91 = vld [vmem:[#allocation4 + $0xa8] sm:$0xff]
    %v92 = vld [vmem:[#allocation4 + $0xb0] sm:$0xff]
    %v93 = vld [vmem:[#allocation4 + $0xb8] sm:$0xff]
    %v94 = vld [vmem:[#allocation4 + $0xc0] sm:$0xff]
    %v95 = vld [vmem:[#allocation4 + $0xc8] sm:$0xff]
    %v96 = vld [vmem:[#allocation4 + $0xd0] sm:$0xff]
    %v97 = vld [vmem:[#allocation4 + $0xd8] sm:$0xff]
    %v98 = vld [vmem:[#allocation4 + $0xe0] sm:$0xff]
    %v99 = vld [vmem:[#allocation4 + $0xe8] sm:$0xff]
    %v100 = vld [vmem:[#allocation4 + $0xf0] sm:$0xff]
    %v101 = vld [vmem:[#allocation4 + $0xf8] sm:$0xff]
    %v104 = vunpack.c.l.s4 1983009808
    %v105 = vunpack.c.0.s8 %v104
    %v106 = vlaneseq
    %v107 = vshrl.u32 %v106, 7
    %v108 = vsub.s32 %v105, %v107
    %v109 = vrot.slane %v69, %v108
    %v110 = vcombine.high %v109, %v109
    %113 = vmatprep.subr.mxu0 0.0
    %114 = vmatpush1.msra.mxu0 %v85
    %115 = vmatprep.subr.mxu0 0.0
    %116 = vmatpush1.msra.mxu0 %v84
    %117 = vmatprep.subr.mxu0 0.0
    %118 = vmatpush1.msra.mxu0 %v83
    %119 = vmatprep.subr.mxu0 0.0
    %120 = vmatpush1.msra.mxu0 %v82
    %121 = vmatprep.subr.mxu0 0.0
    %122 = vmatpush1.msra.mxu0 %v81
    %123 = vmatprep.subr.mxu0 0.0
    %124 = vmatpush1.msra.mxu0 %v80
    %125 = vmatprep.subr.mxu0 0.0
    %126 = vmatpush1.msra.mxu0 %v79
    %127 = vmatprep.subr.mxu0 0.0
    %128 = vmatpush1.msra.mxu0 %v78
    %129 = vmatprep.subr.mxu0 0.0
    %130 = vmatpush1.msra.mxu0 %v77
    %131 = vmatprep.subr.mxu0 0.0
    %132 = vmatpush1.msra.mxu0 %v76
    %133 = vmatprep.subr.mxu0 0.0
    %134 = vmatpush1.msra.mxu0 %v75
    %135 = vmatprep.subr.mxu0 0.0
    %136 = vmatpush1.msra.mxu0 %v74
    %137 = vmatprep.subr.mxu0 0.0
    %138 = vmatpush1.msra.mxu0 %v73
    %139 = vmatprep.subr.mxu0 0.0
    %140 = vmatpush1.msra.mxu0 %v72
    %141 = vmatprep.subr.mxu0 0.0
    %142 = vmatpush1.msra.mxu0 %v71
    %143 = vmatprep.subr.mxu0 0.0
    %144 = vmatpush1.msra.mxu0 %v70
    %145 = vmatprep.subr.mxu0 0.0
    %146 = vmatpush2.msra.mxu0 %v101
    %147 = vmatprep.subr.mxu0 0.0
    %148 = vmatpush2.msra.mxu0 %v100
    %149 = vmatprep.subr.mxu0 0.0
    %150 = vmatpush2.msra.mxu0 %v99
    %151 = vmatprep.subr.mxu0 0.0
    %152 = vmatpush2.msra.mxu0 %v98
    %153 = vmatprep.subr.mxu0 0.0
    %154 = vmatpush2.msra.mxu0 %v97
    %155 = vmatprep.subr.mxu0 0.0
    %156 = vmatpush2.msra.mxu0 %v96
    %157 = vmatprep.subr.mxu0 0.0
    %158 = vmatpush2.msra.mxu0 %v95
    %159 = vmatprep.subr.mxu0 0.0
    %160 = vmatpush2.msra.mxu0 %v94
    %161 = vmatprep.subr.mxu0 0.0
    %162 = vmatpush2.msra.mxu0 %v93
    %163 = vmatprep.subr.mxu0 0.0
    %164 = vmatpush2.msra.mxu0 %v92
    %165 = vmatprep.subr.mxu0 0.0
    %166 = vmatpush2.msra.mxu0 %v91
    %167 = vmatprep.subr.mxu0 0.0
    %168 = vmatpush2.msra.mxu0 %v90
    %169 = vmatprep.subr.mxu0 0.0
    %170 = vmatpush2.msra.mxu0 %v89
    %171 = vmatprep.subr.mxu0 0.0
    %172 = vmatpush2.msra.mxu0 %v88
    %173 = vmatprep.subr.mxu0 0.0
    %174 = vmatpush2.msra.mxu0 %v87
    %175 = vmatprep.subr.mxu0 0.0
    %176 = vmatpush2.msra.mxu0 %v86
    %177 = vmatprep.mubr.f32.mxu0 %v110
    %178 = vmatmul.mubr.f32.gmra.mxu0 %v109
    %v179 = vpop.f32.mrf.mxu0
    %v180 = vadd.f32 0.0, %v179
    %v181 = vpop.f32.mrf.mxu0
    %182 = vdwg.mxu0
    %v183 = vrcp.pop %v180
    %v184 = vmul.f32 1.0, %v183
    %186 = vrot.lane.b32.xlu0 %v184, 1
    %v187 = vpop.permute.xlu0 %186
    %v189 = vmul.f32 %v180, %v187
    %190 = vrot.lane.b32.xlu0 %v184, 2
    %v191 = vpop.permute.xlu0 %190
    %v193 = vmul.f32 %v180, %v191
    %v194 = vld [vmem:[%s2] sm:$0x3]
    %196 = vrot.lane.b32.xlu0 %v194, 1
    %v197 = vpop.permute.xlu0 %196
    %v199 = vsub.f32 %v189, %v197
    %v200 = vand.u32 2147483647, %v199
    %v201 = vsub.f32 %v193, %v197
    %v202 = vand.u32 2147483647, %v201
    %204 = vrot.lane.b32.xlu0 %v202, 127
    %v205 = vpop.permute.xlu0 %204
    %v207 = vadd.f32 %v200, %v205
    %209 = vrot.lane.b32.xlu0 %v207, 127
    %v210 = vpop.permute.xlu0 %209
    %vm212 = vcmask 1024
    %213 = vst.msk [vmem:[%s3] sm:$0x3] %vm212, %v210
    // Predicated region
    $region22: #{tpu_custom_call.1} parent=1 // pred_check
      _
    $region23: #{tpu_custom_call.1} parent=1 // pred_check_branch
      %215 = sbr.rel (0) target = $region25
    $region24: #{tpu_custom_call.1} parent=1 // pred_region
      _
    $region25: #{tpu_custom_call.1} parent=1 // pred_fallthru
      _
    // Predicated region
    $region26: #{tpu_custom_call.1} parent=1 // pred_check
      _
    $region27: #{tpu_custom_call.1} parent=1 // pred_check_branch
      %217 = sbr.rel (0) target = $region29
    $region28: #{tpu_custom_call.1} parent=1 // pred_region
      _
    $region29: #{tpu_custom_call.1} parent=1 // pred_fallthru
      _
    %218 = vsyncpa [#allocation3], 1
    %219 = vsyncpa [#allocation5], 1

</llo_original>
